<compile_context>
chip_gen: v6e
topology: v6e:2x2x1
jax: 0.10.0
libtpu: 0.0.40
codegen_flags: <defaults>
</compile_context>

<pallas_src>
import functools

import jax
import jax.numpy as jnp
from jax.experimental import pallas as pl
from jax.experimental.pallas import tpu as pltpu


def _round_up(x, m):
    return (x + m - 1) // m * m


def _default_block_batch(n, v):
    # Target ~128 rows in the block-diagonal propagation matrix so each
    # diffusion step is one full MXU push; fall back to 1 sample/step when the
    # graph is already >= 128 nodes.
    return max(1, min(n, max(1, 128 // max(v, 1))))


# -----------------------------------------------------------------------------
# Kernels
# -----------------------------------------------------------------------------
def _gcn_rnn_kernel(x_ref, adj0_ref, adj1_ref, mask_ref, w_ref, b_ref, o_ref,
                    *, gdep, alpha, beta, gamma, b_blk, mm_dtype):
    """type == 'RNN':
       h_{k+1} = alpha*x + (beta*A0[n]^T + gamma*A1^T) @ h_k
       ho = concat([h_0..h_gdep], -1) @ W + b
    """
    V = x_ref.shape[1]
    d_pad = o_ref.shape[2]

    # Shared (hyper) half of the propagation matrix, hoisted once per step.
    adj1_t = gamma * adj1_ref[...].T                         # (V, V) f32

    # Per-sample combined transposed propagation matrices, assembled into a
    # single block-diagonal (b_blk*V, b_blk*V) matrix (mask zeroes the
    # off-diagonal sample-coupling blocks).
    m_rows = jnp.concatenate(
        [beta * adj0_ref[b].T + adj1_t for b in range(b_blk)], axis=0)  # (BV, V)
    block_m = (jnp.concatenate([m_rows] * b_blk, axis=-1)
               * mask_ref[...]).astype(mm_dtype)             # (BV, BV)

    # Whole batch-block as one (BV, C) slab.
    x0 = jnp.concatenate([x_ref[b] for b in range(b_blk)], axis=0)      # (BV, C)

    h = x0
    hs = [h]
    for _ in range(gdep):
        h = alpha * x0 + jnp.dot(block_m, h.astype(mm_dtype),
                                 preferred_element_type=jnp.float32)
        hs.append(h)
    hcat = jnp.concatenate(hs, axis=-1)                      # (BV, (gdep+1)*C)

    out = jnp.dot(hcat.astype(mm_dtype), w_ref[...].astype(mm_dtype),
                  preferred_element_type=jnp.float32) + b_ref[...]
    o_ref[...] = out.reshape(b_blk, V, d_pad).astype(o_ref.dtype)


def _gcn_hyper_kernel(x_ref, adj_ref, mask_ref, w1_ref, b1_ref, w2_ref, b2_ref,
                      w3_ref, b3_ref, o_ref,
                      *, gdep, alpha, gamma, b_blk, mm_dtype):
    """type == 'hyper':
       h_{k+1} = alpha*x + gamma*(A^T @ h_k)
       ho = fc3(sigmoid(fc2(sigmoid(fc1(concat(h_0..h_gdep))))))
    """
    V = x_ref.shape[1]
    d_pad = o_ref.shape[2]

    a_t = gamma * adj_ref[...].T                             # (V, V) shared
    row = jnp.concatenate([a_t] * b_blk, axis=-1)            # (V, BV)
    block_m = (jnp.concatenate([row] * b_blk, axis=0)
               * mask_ref[...]).astype(mm_dtype)             # (BV, BV)

    x0 = jnp.concatenate([x_ref[b] for b in range(b_blk)], axis=0)      # (BV, C)

    h = x0
    hs = [h]
    for _ in range(gdep):
        h = alpha * x0 + jnp.dot(block_m, h.astype(mm_dtype),
                                 preferred_element_type=jnp.float32)
        hs.append(h)
    hcat = jnp.concatenate(hs, axis=-1)                      # (BV, (gdep+1)*C)

    z = jax.nn.sigmoid(
        jnp.dot(hcat.astype(mm_dtype), w1_ref[...].astype(mm_dtype),
                preferred_element_type=jnp.float32) + b1_ref[...])
    z = jax.nn.sigmoid(
        jnp.dot(z.astype(mm_dtype), w2_ref[...].astype(mm_dtype),
                preferred_element_type=jnp.float32) + b2_ref[...])
    z = jnp.dot(z.astype(mm_dtype), w3_ref[...].astype(mm_dtype),
                preferred_element_type=jnp.float32) + b3_ref[...]
    o_ref[...] = z.reshape(b_blk, V, d_pad).astype(o_ref.dtype)


# -----------------------------------------------------------------------------
# Wrappers
# -----------------------------------------------------------------------------
def gcn_rnn_forward(x, adj0, adj1, w, b, *, gdep, alpha, beta, gamma,
                    b_blk=None, matmul_dtype=jnp.float32):
    N, V, C = x.shape
    K, d_out = w.shape
    assert K == (gdep + 1) * C

    # Lane-dense output: pad output channels to a multiple of 128.
    d_pad = _round_up(d_out, 128)
    if d_pad != d_out:
        w = jnp.pad(w, ((0, 0), (0, d_pad - d_out)))
        b = jnp.pad(b, (0, d_pad - d_out))
    b2d = b.reshape(1, d_pad)

    # Several samples per grid step (block-diagonal diffusion).
    if b_blk is None:
        b_blk = _default_block_batch(N, V)
    n_pad = _round_up(N, b_blk)
    if n_pad != N:
        x = jnp.pad(x, ((0, n_pad - N), (0, 0), (0, 0)))
        adj0 = jnp.pad(adj0, ((0, n_pad - N), (0, 0), (0, 0)))

    bv = b_blk * V
    # Constant block-diagonal ones pattern (structural, not data-dependent).
    mask = jnp.kron(jnp.eye(b_blk, dtype=x.dtype),
                    jnp.ones((V, V), dtype=x.dtype))         # (BV, BV)

    flops = n_pad * (gdep * 2 * b_blk * V * V * C + 2 * V * K * d_pad)
    bytes_accessed = 4 * (x.size + adj0.size + adj1.size + mask.size
                          + w.size + b2d.size + n_pad * V * d_pad)
    cost = pl.CostEstimate(flops=flops, transcendentals=0,
                           bytes_accessed=bytes_accessed)

    kernel = functools.partial(_gcn_rnn_kernel, gdep=gdep, alpha=alpha,
                               beta=beta, gamma=gamma, b_blk=b_blk,
                               mm_dtype=matmul_dtype)
    out = pl.pallas_call(
        kernel,
        out_shape=jax.ShapeDtypeStruct((n_pad, V, d_pad), x.dtype),
        grid_spec=pltpu.PrefetchScalarGridSpec(
            num_scalar_prefetch=0,
            grid=(n_pad // b_blk,),
            in_specs=[
                pl.BlockSpec((b_blk, V, C), lambda n: (n, 0, 0)),
                pl.BlockSpec((b_blk, V, V), lambda n: (n, 0, 0)),
                pl.BlockSpec((V, V), lambda n: (0, 0)),
                pl.BlockSpec((bv, bv), lambda n: (0, 0)),
                pl.BlockSpec((K, d_pad), lambda n: (0, 0)),
                pl.BlockSpec((1, d_pad), lambda n: (0, 0)),
            ],
            out_specs=pl.BlockSpec((b_blk, V, d_pad), lambda n: (n, 0, 0)),
        ),
        compiler_params=pltpu.CompilerParams(
            dimension_semantics=("parallel",)),
        cost_estimate=cost,
    )(x, adj0, adj1, mask, w, b2d)
    return out[:N, :, :d_out]


def gcn_hyper_forward(x, adj, w1, b1, w2, b2, w3, b3, *, gdep, alpha, gamma,
                      b_blk=None, matmul_dtype=jnp.float32):
    N, V, C = x.shape
    K, d1 = w1.shape
    d2 = w2.shape[1]
    d3 = w3.shape[1]
    assert K == (gdep + 1) * C

    # Only the final (stored) layer needs lane-dense padding.
    d3_pad = _round_up(d3, 128)
    if d3_pad != d3:
        w3 = jnp.pad(w3, ((0, 0), (0, d3_pad - d3)))
        b3 = jnp.pad(b3, (0, d3_pad - d3))

    if b_blk is None:
        b_blk = _default_block_batch(N, V)
    n_pad = _round_up(N, b_blk)
    if n_pad != N:
        x = jnp.pad(x, ((0, n_pad - N), (0, 0), (0, 0)))

    bv = b_blk * V
    mask = jnp.kron(jnp.eye(b_blk, dtype=x.dtype),
                    jnp.ones((V, V), dtype=x.dtype))         # (BV, BV)

    flops = n_pad * (gdep * 2 * b_blk * V * V * C
                     + 2 * V * (K * d1 + d1 * d2 + d2 * d3_pad))
    transcendentals = n_pad * V * (d1 + d2)
    bytes_accessed = 4 * (x.size + adj.size + mask.size + w1.size + w2.size
                          + w3.size + d1 + d2 + d3_pad + n_pad * V * d3_pad)
    cost = pl.CostEstimate(flops=flops, transcendentals=transcendentals,
                           bytes_accessed=bytes_accessed)

    kernel = functools.partial(_gcn_hyper_kernel, gdep=gdep, alpha=alpha,
                               gamma=gamma, b_blk=b_blk,
                               mm_dtype=matmul_dtype)
    out = pl.pallas_call(
        kernel,
        out_shape=jax.ShapeDtypeStruct((n_pad, V, d3_pad), x.dtype),
        grid_spec=pltpu.PrefetchScalarGridSpec(
            num_scalar_prefetch=0,
            grid=(n_pad // b_blk,),
            in_specs=[
                pl.BlockSpec((b_blk, V, C), lambda n: (n, 0, 0)),
                pl.BlockSpec((V, V), lambda n: (0, 0)),
                pl.BlockSpec((bv, bv), lambda n: (0, 0)),
                pl.BlockSpec((K, d1), lambda n: (0, 0)),
                pl.BlockSpec((1, d1), lambda n: (0, 0)),
                pl.BlockSpec((d1, d2), lambda n: (0, 0)),
                pl.BlockSpec((1, d2), lambda n: (0, 0)),
                pl.BlockSpec((d2, d3_pad), lambda n: (0, 0)),
                pl.BlockSpec((1, d3_pad), lambda n: (0, 0)),
            ],
            out_specs=pl.BlockSpec((b_blk, V, d3_pad), lambda n: (n, 0, 0)),
        ),
        compiler_params=pltpu.CompilerParams(
            dimension_semantics=("parallel",)),
        cost_estimate=cost,
    )(x, adj, mask, w1, b1.reshape(1, d1), w2, b2.reshape(1, d2),
      w3, b3.reshape(1, d3_pad))
    return out[:N, :, :d3]


# -----------------------------------------------------------------------------
# Pure-JAX references (for correctness check)
# -----------------------------------------------------------------------------
def _ref_rnn(x, adj0, adj1, w, b, *, gdep, alpha, beta, gamma):
    h = x
    out = [h]
    for _ in range(gdep):
        h = (alpha * x
             + beta * jnp.einsum('nvc,nvw->nwc', h, adj0)
             + gamma * jnp.einsum('nvc,vw->nwc', h, adj1))
        out.append(h)
    ho = jnp.concatenate(out, axis=-1)
    return ho @ w + b


def _ref_hyper(x, adj, w1, b1, w2, b2, w3, b3, *, gdep, alpha, gamma):
    h = x
    out = [h]
    for _ in range(gdep):
        h = alpha * x + gamma * jnp.einsum('nvc,vw->nwc', h, adj)
        out.append(h)
    ho = jnp.concatenate(out, axis=-1)
    z = jax.nn.sigmoid(ho @ w1 + b1)
    z = jax.nn.sigmoid(z @ w2 + b2)
    return z @ w3 + b3


# -----------------------------------------------------------------------------
# Main
# -----------------------------------------------------------------------------
if __name__ == "__main__":
    key = jax.random.PRNGKey(0)
    N, V, C = 2, 16, 32          # batch, num_nodes, input channels (dims[0])
    gdep = 2
    alpha, beta, gamma = 0.05, 0.95, 0.90

    ks = jax.random.split(key, 12)
    x = jax.random.normal(ks[0], (N, V, C), jnp.float32)

    # ---------------- RNN type ----------------
    dims_rnn = (C, 64)                       # (dims[0], dims[1])
    adj0 = jax.nn.softmax(jax.random.normal(ks[1], (N, V, V), jnp.float32), -1)
    adj1 = jax.nn.softmax(jax.random.normal(ks[2], (V, V), jnp.float32), -1)
    w_rnn = jax.random.normal(ks[3], ((gdep + 1) * C, dims_rnn[1]),
                              jnp.float32) * 0.1
    b_rnn = jax.random.normal(ks[4], (dims_rnn[1],), jnp.float32) * 0.1

    out_rnn = gcn_rnn_forward(x, adj0, adj1, w_rnn, b_rnn,
                              gdep=gdep, alpha=alpha, beta=beta, gamma=gamma)
    jax.block_until_ready(out_rnn)
    ref_rnn = _ref_rnn(x, adj0, adj1, w_rnn, b_rnn,
                       gdep=gdep, alpha=alpha, beta=beta, gamma=gamma)
    assert out_rnn.shape == (N, V, dims_rnn[1])
    assert jnp.allclose(out_rnn, ref_rnn, atol=1e-4, rtol=1e-4)

    # ---------------- hyper type ----------------
    dims_hyp = (C, 32, 16, 64)               # dims[0..3]
    adj_h = jax.nn.softmax(jax.random.normal(ks[5], (V, V), jnp.float32), -1)
    w1 = jax.random.normal(ks[6], ((gdep + 1) * C, dims_hyp[1]), jnp.float32) * 0.1
    b1 = jax.random.normal(ks[7], (dims_hyp[1],), jnp.float32) * 0.1
    w2 = jax.random.normal(ks[8], (dims_hyp[1], dims_hyp[2]), jnp.float32) * 0.1
    b2 = jax.random.normal(ks[9], (dims_hyp[2],), jnp.float32) * 0.1
    w3 = jax.random.normal(ks[10], (dims_hyp[2], dims_hyp[3]), jnp.float32) * 0.1
    b3 = jax.random.normal(ks[11], (dims_hyp[3],), jnp.float32) * 0.1

    out_hyp = gcn_hyper_forward(x, adj_h, w1, b1, w2, b2, w3, b3,
                                gdep=gdep, alpha=alpha, gamma=gamma)
    jax.block_until_ready(out_hyp)
    ref_hyp = _ref_hyper(x, adj_h, w1, b1, w2, b2, w3, b3,
                         gdep=gdep, alpha=alpha, gamma=gamma)
    assert out_hyp.shape == (N, V, dims_hyp[3])
    assert jnp.allclose(out_hyp, ref_hyp, atol=1e-4, rtol=1e-4)

    print("KERNEL_OK")
</pallas_src>

<mosaic_0001>
module attributes {stable_mosaic.version = 11 : i64} {
  func.func @_gcn_rnn_kernel(%arg0: i32, %arg1: memref<2x16x32xf32, #tpu.memory_space<vmem>>, %arg2: memref<2x16x16xf32, #tpu.memory_space<vmem>>, %arg3: memref<16x16xf32, #tpu.memory_space<vmem>>, %arg4: memref<32x32xf32, #tpu.memory_space<vmem>>, %arg5: memref<96x128xf32, #tpu.memory_space<vmem>>, %arg6: memref<1x128xf32, #tpu.memory_space<vmem>>, %arg7: memref<2x16x128xf32, #tpu.memory_space<vmem>>) attributes {dimension_semantics = [#tpu.dimension_semantics<parallel>], iteration_bounds = array<i64: 1>, scalar_prefetch = 0 : i64, scratch_operands = 0 : i64, tpu.core_type = #tpu.core_type<tc>, window_params = [{transform_indices = @transform_0, window_bounds = array<i64: 2, 16, 32>}, {transform_indices = @transform_1, window_bounds = array<i64: 2, 16, 16>}, {pipeline_mode = #tpu.pipeline_mode<synchronous>, transform_indices = @transform_2, window_bounds = array<i64: 16, 16>}, {pipeline_mode = #tpu.pipeline_mode<synchronous>, transform_indices = @transform_3, window_bounds = array<i64: 32, 32>}, {pipeline_mode = #tpu.pipeline_mode<synchronous>, transform_indices = @transform_4, window_bounds = array<i64: 96, 128>}, {pipeline_mode = #tpu.pipeline_mode<synchronous>, transform_indices = @transform_5, window_bounds = array<i64: 1, 128>}, {transform_indices = @transform_6, window_bounds = array<i64: 2, 16, 128>}]} {
    %c0 = arith.constant 0 : index
    %c0_0 = arith.constant 0 : index
    %0 = vector.load %arg3[%c0, %c0_0] : memref<16x16xf32, #tpu.memory_space<vmem>>, vector<16x16xf32>
    %1 = tpu.transpose %0, [1, 0] : vector<16x16xf32> -> vector<16x16xf32>
    %cst = arith.constant 0.899999976 : f32
    %2 = vector.broadcast %cst : f32 to vector<16x16xf32>
    %3 = arith.mulf %2, %1 : vector<16x16xf32>
    %c0_1 = arith.constant 0 : index
    %c0_2 = arith.constant 0 : index
    %c0_3 = arith.constant 0 : index
    %4 = vector.load %arg2[%c0_1, %c0_2, %c0_3] : memref<2x16x16xf32, #tpu.memory_space<vmem>>, vector<1x16x16xf32>
    %5 = vector.shape_cast %4 : vector<1x16x16xf32> to vector<16x16xf32>
    %6 = tpu.transpose %5, [1, 0] : vector<16x16xf32> -> vector<16x16xf32>
    %cst_4 = arith.constant 0.949999988 : f32
    %7 = vector.broadcast %cst_4 : f32 to vector<16x16xf32>
    %8 = arith.mulf %7, %6 : vector<16x16xf32>
    %9 = arith.addf %8, %3 : vector<16x16xf32>
    %c1 = arith.constant 1 : index
    %c0_5 = arith.constant 0 : index
    %c0_6 = arith.constant 0 : index
    %10 = vector.load %arg2[%c1, %c0_5, %c0_6] : memref<2x16x16xf32, #tpu.memory_space<vmem>>, vector<1x16x16xf32>
    %11 = vector.shape_cast %10 : vector<1x16x16xf32> to vector<16x16xf32>
    %12 = tpu.transpose %11, [1, 0] : vector<16x16xf32> -> vector<16x16xf32>
    %cst_7 = arith.constant 0.949999988 : f32
    %13 = vector.broadcast %cst_7 : f32 to vector<16x16xf32>
    %14 = arith.mulf %13, %12 : vector<16x16xf32>
    %15 = arith.addf %14, %3 : vector<16x16xf32>
    %16 = tpu.concatenate %9, %15 in 0 : vector<16x16xf32>, vector<16x16xf32> -> vector<32x16xf32>
    %17 = tpu.concatenate %16, %16 in 1 : vector<32x16xf32>, vector<32x16xf32> -> vector<32x32xf32>
    %c0_8 = arith.constant 0 : index
    %c0_9 = arith.constant 0 : index
    %18 = vector.load %arg4[%c0_8, %c0_9] : memref<32x32xf32, #tpu.memory_space<vmem>>, vector<32x32xf32>
    %19 = arith.mulf %17, %18 : vector<32x32xf32>
    %c0_10 = arith.constant 0 : index
    %c0_11 = arith.constant 0 : index
    %c0_12 = arith.constant 0 : index
    %20 = vector.load %arg1[%c0_10, %c0_11, %c0_12] : memref<2x16x32xf32, #tpu.memory_space<vmem>>, vector<1x16x32xf32>
    %21 = vector.shape_cast %20 : vector<1x16x32xf32> to vector<16x32xf32>
    %c1_13 = arith.constant 1 : index
    %c0_14 = arith.constant 0 : index
    %c0_15 = arith.constant 0 : index
    %22 = vector.load %arg1[%c1_13, %c0_14, %c0_15] : memref<2x16x32xf32, #tpu.memory_space<vmem>>, vector<1x16x32xf32>
    %23 = vector.shape_cast %22 : vector<1x16x32xf32> to vector<16x32xf32>
    %24 = tpu.concatenate %21, %23 in 0 : vector<16x32xf32>, vector<16x32xf32> -> vector<32x32xf32>
    %cst_16 = arith.constant 5.000000e-02 : f32
    %25 = vector.broadcast %cst_16 : f32 to vector<32x32xf32>
    %26 = arith.mulf %25, %24 : vector<32x32xf32>
    %cst_17 = arith.constant dense<0.000000e+00> : vector<32x32xf32>
    %27 = tpu.matmul %19, %24, %cst_17 {dimension_numbers = #tpu.dot_dimension_numbers<[1], [0], [0], [1], [0, 0, 1, 1], [], []>} : vector<32x32xf32>, vector<32x32xf32>, vector<32x32xf32> -> vector<32x32xf32>
    %28 = arith.addf %26, %27 : vector<32x32xf32>
    %cst_18 = arith.constant 5.000000e-02 : f32
    %29 = vector.broadcast %cst_18 : f32 to vector<32x32xf32>
    %30 = arith.mulf %29, %24 : vector<32x32xf32>
    %cst_19 = arith.constant dense<0.000000e+00> : vector<32x32xf32>
    %31 = tpu.matmul %19, %28, %cst_19 {dimension_numbers = #tpu.dot_dimension_numbers<[1], [0], [0], [1], [0, 0, 1, 1], [], []>} : vector<32x32xf32>, vector<32x32xf32>, vector<32x32xf32> -> vector<32x32xf32>
    %32 = arith.addf %30, %31 : vector<32x32xf32>
    %33 = tpu.concatenate %24, %28, %32 in 1 : vector<32x32xf32>, vector<32x32xf32>, vector<32x32xf32> -> vector<32x96xf32>
    %c0_20 = arith.constant 0 : index
    %c0_21 = arith.constant 0 : index
    %34 = vector.load %arg5[%c0_20, %c0_21] : memref<96x128xf32, #tpu.memory_space<vmem>>, vector<96x128xf32>
    %cst_22 = arith.constant dense<0.000000e+00> : vector<32x128xf32>
    %35 = tpu.matmul %33, %34, %cst_22 {dimension_numbers = #tpu.dot_dimension_numbers<[1], [0], [0], [1], [0, 0, 1, 1], [], []>} : vector<32x96xf32>, vector<96x128xf32>, vector<32x128xf32> -> vector<32x128xf32>
    %c0_23 = arith.constant 0 : index
    %c0_24 = arith.constant 0 : index
    %36 = vector.load %arg6[%c0_23, %c0_24] : memref<1x128xf32, #tpu.memory_space<vmem>>, vector<1x128xf32>
    %37 = vector.broadcast %36 : vector<1x128xf32> to vector<32x128xf32>
    %38 = arith.addf %35, %37 : vector<32x128xf32>
    %39 = vector.shape_cast %38 : vector<32x128xf32> to vector<2x16x128xf32>
    %c0_25 = arith.constant 0 : index
    %c0_26 = arith.constant 0 : index
    %c0_27 = arith.constant 0 : index
    %40 = vector.load %arg7[%c0_25, %c0_26, %c0_27] : memref<2x16x128xf32, #tpu.memory_space<vmem>>, vector<2x16x128xf32>
    tpu.vector_store %arg7[%c0_25, %c0_26, %c0_27], %39 {strides = array<i32>} : memref<2x16x128xf32, #tpu.memory_space<vmem>>, vector<2x16x128xf32>,
    return
  }
  func.func @transform_0(%arg0: i32) -> (i32, i32, i32) {
    %c0_i32 = arith.constant 0 : i32
    %c0_i32_0 = arith.constant 0 : i32
    %c0_i32_1 = arith.constant 0 : i32
    return %arg0, %c0_i32, %c0_i32_0 : i32, i32, i32
  }
  func.func @transform_1(%arg0: i32) -> (i32, i32, i32) {
    %c0_i32 = arith.constant 0 : i32
    %c0_i32_0 = arith.constant 0 : i32
    %c0_i32_1 = arith.constant 0 : i32
    return %arg0, %c0_i32, %c0_i32_0 : i32, i32, i32
  }
  func.func @transform_2(%arg0: i32) -> (i32, i32) {
    %c0_i32 = arith.constant 0 : i32
    %c0_i32_0 = arith.constant 0 : i32
    %c0_i32_1 = arith.constant 0 : i32
    return %c0_i32, %c0_i32_0 : i32, i32
  }
  func.func @transform_3(%arg0: i32) -> (i32, i32) {
    %c0_i32 = arith.constant 0 : i32
    %c0_i32_0 = arith.constant 0 : i32
    %c0_i32_1 = arith.constant 0 : i32
    return %c0_i32, %c0_i32_0 : i32, i32
  }
  func.func @transform_4(%arg0: i32) -> (i32, i32) {
    %c0_i32 = arith.constant 0 : i32
    %c0_i32_0 = arith.constant 0 : i32
    %c0_i32_1 = arith.constant 0 : i32
    return %c0_i32, %c0_i32_0 : i32, i32
  }
  func.func @transform_5(%arg0: i32) -> (i32, i32) {
    %c0_i32 = arith.constant 0 : i32
    %c0_i32_0 = arith.constant 0 : i32
    %c0_i32_1 = arith.constant 0 : i32
    return %c0_i32, %c0_i32_0 : i32, i32
  }
  func.func @transform_6(%arg0: i32) -> (i32, i32, i32) {
    %c0_i32 = arith.constant 0 : i32
    %c0_i32_0 = arith.constant 0 : i32
    %c0_i32_1 = arith.constant 0 : i32
    return %arg0, %c0_i32, %c0_i32_0 : i32, i32, i32
  }
}

</mosaic_0001>

<llo_original>
// kernel: tpu_custom_call.1
$region0: #{tpu_custom_call.1}
  #allocation0 [shape = 'u32[]', space=smem, size = 0x4, offset = 0x4, fixed_abs, tag = 'smem constant byte address 0x4 - core index']
  #allocation1 [shape = 'u32[144,128]{1,0:T(1,128)}', space=vmem, size = 0x12000, scoped, tag = 'internal scratch']
  %s0 = inlined_call_operand.hbm [shape: f32[2,16,32], index: 0, kind: input, shape index: {}]
  %s1 = inlined_call_operand.hbm [shape: f32[2,16,16], index: 1, kind: input, shape index: {}]
  %s2 = inlined_call_operand.hbm [shape: f32[16,16], index: 2, kind: input, shape index: {}]
  %s3 = inlined_call_operand.hbm [shape: f32[32,32], index: 3, kind: input, shape index: {}]
  %s4 = inlined_call_operand.hbm [shape: f32[96,128], index: 4, kind: input, shape index: {}]
  %s5 = inlined_call_operand.vmem [shape: f32[1,128], index: 5, kind: input, shape index: {}]
  %s6 = inlined_call_operand.hbm [shape: f32[2,16,128], index: 6, kind: output, shape index: {}]
  %s7 = sld [smem:[#allocation0]]
  $region54: #{tpu_custom_call.1} parent=0
    _
  %s9 = ssub.s32 1, %s7
  %s10 = scalar_select 0, %s9, %s7
  $region1: #{tpu_custom_call.1} parent=0
    #allocation2 [shape = 'u8[16384]{0}', space=vmem, size = 0x4000, scoped, tag = 'input window, operand 0, single buffered']
    #allocation3 [shape = 's32[1]{0}', space=sflag, size = 0x4, scoped, tag = 'scoped memory for tpu_custom_call.1']
    #allocation4 [shape = 's32[1]{0}', space=sflag, size = 0x4, scoped, tag = 'scoped memory for tpu_custom_call.1']
    #allocation5 [shape = 'u8[16384]{0}', space=vmem, size = 0x4000, scoped, tag = 'input window, operand 1, single buffered']
    #allocation6 [shape = 's32[1]{0}', space=sflag, size = 0x4, scoped, tag = 'scoped memory for tpu_custom_call.1']
    #allocation7 [shape = 'u8[8192]{0}', space=vmem, size = 0x2000, scoped, tag = 'input window, operand 2, single buffered']
    #allocation8 [shape = 'u8[16384]{0}', space=vmem, size = 0x4000, scoped, tag = 'input window, operand 3, single buffered']
    #allocation9 [shape = 's32[1]{0}', space=sflag, size = 0x4, scoped, tag = 'scoped memory for tpu_custom_call.1']
    #allocation10 [shape = 'u8[49152]{0}', space=vmem, size = 0xc000, scoped, tag = 'input window, operand 4, single buffered']
    #allocation11 [shape = 'u8[16384]{0}', space=vmem, size = 0x4000, scoped, tag = 'output window, operand 0, single buffered']
    %11 = vsyncpa [#allocation3], 0
    %12 = vsyncpa [#allocation6], 0
    %13 = vsyncpa [#allocation9], 0
    %14 = vsyncpa [#allocation4], 0
    // Predicated region
    $region2: #{tpu_custom_call.1} parent=1 // pred_check
      _
    $region3: #{tpu_custom_call.1} parent=1 // pred_check_branch
      %16 = sbr.rel (0) target = $region5
    $region4: #{tpu_custom_call.1} parent=1 // pred_region
      %s18 = ssub.s32 512, 512
      %19 = vsyncadd [#allocation3], %s18
      %s20 = sshll.u32 [#allocation2], 4
      %s21 = int_to_ptr.vmem [resolvable:$true] %s20
      %26 = dma.hbm_to_vmem [thread:$0]  %s0, 512, %s21, [#allocation3], 128, 128, 8
    $region5: #{tpu_custom_call.1} parent=1 // pred_fallthru
      _
    // Predicated region
    $region6: #{tpu_custom_call.1} parent=1 // pred_check
      _
    $region7: #{tpu_custom_call.1} parent=1 // pred_check_branch
      %28 = sbr.rel (0) target = $region9
    $region8: #{tpu_custom_call.1} parent=1 // pred_region
      %s30 = ssub.s32 512, 512
      %31 = vsyncadd [#allocation6], %s30
      %s32 = sshll.u32 [#allocation5], 4
      %s33 = int_to_ptr.vmem [resolvable:$true] %s32
      %38 = dma.hbm_to_vmem [thread:$0]  %s1, 512, %s33, [#allocation6], 128, 128, 8
    $region9: #{tpu_custom_call.1} parent=1 // pred_fallthru
      _
    // Predicated region
    $region10: #{tpu_custom_call.1} parent=1 // pred_check
      _
    $region11: #{tpu_custom_call.1} parent=1 // pred_check_branch
      %40 = sbr.rel (0) target = $region13
    $region12: #{tpu_custom_call.1} parent=1 // pred_region
      %s42 = ssub.s32 256, 256
      %43 = vsyncadd [#allocation6], %s42
      %s44 = sshll.u32 [#allocation7], 4
      %s45 = int_to_ptr.vmem [resolvable:$true] %s44
      %50 = dma.hbm_to_vmem [thread:$0]  %s2, 256, %s45, [#allocation6], 128, 128, 8
    $region13: #{tpu_custom_call.1} parent=1 // pred_fallthru
      _
    // Predicated region
    $region14: #{tpu_custom_call.1} parent=1 // pred_check
      _
    $region15: #{tpu_custom_call.1} parent=1 // pred_check_branch
      %52 = sbr.rel (0) target = $region17
    $region16: #{tpu_custom_call.1} parent=1 // pred_region
      %s54 = ssub.s32 512, 512
      %55 = vsyncadd [#allocation9], %s54
      %s56 = sshll.u32 [#allocation8], 4
      %s57 = int_to_ptr.vmem [resolvable:$true] %s56
      %62 = dma.hbm_to_vmem [thread:$0]  %s3, 512, %s57, [#allocation9], 128, 128, 8
    $region17: #{tpu_custom_call.1} parent=1 // pred_fallthru
      _
    // Predicated region
    $region18: #{tpu_custom_call.1} parent=1 // pred_check
      _
    $region19: #{tpu_custom_call.1} parent=1 // pred_check_branch
      %64 = sbr.rel (0) target = $region21
    $region20: #{tpu_custom_call.1} parent=1 // pred_region
      %s66 = ssub.s32 1536, 1536
      %67 = vsyncadd [#allocation9], %s66
      %s68 = sshll.u32 [#allocation10], 4
      %s69 = int_to_ptr.vmem [resolvable:$true] %s68
      %74 = dma.hbm_to_vmem [thread:$0]  %s4, 1536, %s69, [#allocation9], 128, 128, 8
    $region21: #{tpu_custom_call.1} parent=1 // pred_fallthru
      _
    // Predicated region
    $region22: #{tpu_custom_call.1} parent=1 // pred_check
      _
    $region23: #{tpu_custom_call.1} parent=1 // pred_check_branch
      %76 = sbr.rel (0) target = $region25
    $region24: #{tpu_custom_call.1} parent=1 // pred_region
      _
    $region25: #{tpu_custom_call.1} parent=1 // pred_fallthru
      _
    // Predicated region
    $region26: #{tpu_custom_call.1} parent=1 // pred_check
      _
    $region27: #{tpu_custom_call.1} parent=1 // pred_check_branch
      %78 = sbr.rel (0) target = $region29
    $region28: #{tpu_custom_call.1} parent=1 // pred_region
      %79 = dma.done [#allocation3], 512
    $region29: #{tpu_custom_call.1} parent=1 // pred_fallthru
      _
    // Predicated region
    $region30: #{tpu_custom_call.1} parent=1 // pred_check
      _
    $region31: #{tpu_custom_call.1} parent=1 // pred_check_branch
      %81 = sbr.rel (0) target = $region33
    $region32: #{tpu_custom_call.1} parent=1 // pred_region
      %82 = dma.done [#allocation6], 512
    $region33: #{tpu_custom_call.1} parent=1 // pred_fallthru
      _
    // Predicated region
    $region34: #{tpu_custom_call.1} parent=1 // pred_check
      _
    $region35: #{tpu_custom_call.1} parent=1 // pred_check_branch
      %84 = sbr.rel (0) target = $region37
    $region36: #{tpu_custom_call.1} parent=1 // pred_region
      %85 = dma.done [#allocation6], 256
    $region37: #{tpu_custom_call.1} parent=1 // pred_fallthru
      _
    // Predicated region
    $region38: #{tpu_custom_call.1} parent=1 // pred_check
      _
    $region39: #{tpu_custom_call.1} parent=1 // pred_check_branch
      %87 = sbr.rel (0) target = $region41
    $region40: #{tpu_custom_call.1} parent=1 // pred_region
      %88 = dma.done [#allocation9], 512
    $region41: #{tpu_custom_call.1} parent=1 // pred_fallthru
      _
    // Predicated region
    $region42: #{tpu_custom_call.1} parent=1 // pred_check
      _
    $region43: #{tpu_custom_call.1} parent=1 // pred_check_branch
      %90 = sbr.rel (0) target = $region45
    $region44: #{tpu_custom_call.1} parent=1 // pred_region
      %91 = dma.done [#allocation9], 1536
    $region45: #{tpu_custom_call.1} parent=1 // pred_fallthru
      _
    %v92 = vld [vmem:[#allocation7] sm:$0xff]
    %v93 = vld [vmem:[#allocation7 + $0x8] sm:$0xff]
    %94 = vxpose.xlu0.b32.start [1/16] %v92, 128
    %95 = vxpose.xlu0.b32.cont [2/16] %v93, 128
    %96 = vxpose.xlu0.b32.cont [3/16] 0.0, 128
    %97 = vxpose.xlu0.b32.cont [4/16] 0.0, 128
    %98 = vxpose.xlu0.b32.cont [5/16] 0.0, 128
    %99 = vxpose.xlu0.b32.cont [6/16] 0.0, 128
    %100 = vxpose.xlu0.b32.cont [7/16] 0.0, 128
    %101 = vxpose.xlu0.b32.cont [8/16] 0.0, 128
    %102 = vxpose.xlu0.b32.cont [9/16] 0.0, 128
    %103 = vxpose.xlu0.b32.cont [10/16] 0.0, 128
    %104 = vxpose.xlu0.b32.cont [11/16] 0.0, 128
    %105 = vxpose.xlu0.b32.cont [12/16] 0.0, 128
    %106 = vxpose.xlu0.b32.cont [13/16] 0.0, 128
    %107 = vxpose.xlu0.b32.cont [14/16] 0.0, 128
    %108 = vxpose.xlu0.b32.cont [15/16] 0.0, 128
    %109 = vxpose.xlu0.b32.end [16/16] 0.0, 128
    %v110 = vpop.trf.xlu0
    %v111 = vpop.trf.xlu0
    %v112 = vpop.trf.xlu0
    %v113 = vpop.trf.xlu0
    %v114 = vpop.trf.xlu0
    %v115 = vpop.trf.xlu0
    %v116 = vpop.trf.xlu0
    %v117 = vpop.trf.xlu0
    %v118 = vpop.trf.xlu0
    %v119 = vpop.trf.xlu0
    %v120 = vpop.trf.xlu0
    %v121 = vpop.trf.xlu0
    %v122 = vpop.trf.xlu0
    %v123 = vpop.trf.xlu0
    %v124 = vpop.trf.xlu0
    %v125 = vpop.trf.xlu0
    %v126 = vmul.f32 %v110, 0.9
    %v127 = vmul.f32 %v111, 0.9
    %v128 = vld [vmem:[#allocation5] sm:$0xff]
    %v129 = vld [vmem:[#allocation5 + $0x8] sm:$0xff]
    %130 = vxpose.xlu0.b32.start [1/16] %v128, 128
    %131 = vxpose.xlu0.b32.cont [2/16] %v129, 128
    %132 = vxpose.xlu0.b32.cont [3/16] 0.0, 128
    %133 = vxpose.xlu0.b32.cont [4/16] 0.0, 128
    %134 = vxpose.xlu0.b32.cont [5/16] 0.0, 128
    %135 = vxpose.xlu0.b32.cont [6/16] 0.0, 128
    %136 = vxpose.xlu0.b32.cont [7/16] 0.0, 128
    %137 = vxpose.xlu0.b32.cont [8/16] 0.0, 128
    %138 = vxpose.xlu0.b32.cont [9/16] 0.0, 128
    %139 = vxpose.xlu0.b32.cont [10/16] 0.0, 128
    %140 = vxpose.xlu0.b32.cont [11/16] 0.0, 128
    %141 = vxpose.xlu0.b32.cont [12/16] 0.0, 128
    %142 = vxpose.xlu0.b32.cont [13/16] 0.0, 128
    %143 = vxpose.xlu0.b32.cont [14/16] 0.0, 128
    %144 = vxpose.xlu0.b32.cont [15/16] 0.0, 128
    %145 = vxpose.xlu0.b32.end [16/16] 0.0, 128
    %v146 = vpop.trf.xlu0
    %v147 = vpop.trf.xlu0
    %v148 = vpop.trf.xlu0
    %v149 = vpop.trf.xlu0
    %v150 = vpop.trf.xlu0
    %v151 = vpop.trf.xlu0
    %v152 = vpop.trf.xlu0
    %v153 = vpop.trf.xlu0
    %v154 = vpop.trf.xlu0
    %v155 = vpop.trf.xlu0
    %v156 = vpop.trf.xlu0
    %v157 = vpop.trf.xlu0
    %v158 = vpop.trf.xlu0
    %v159 = vpop.trf.xlu0
    %v160 = vpop.trf.xlu0
    %v161 = vpop.trf.xlu0
    %v162 = vmul.f32 %v146, 0.95
    %v163 = vmul.f32 %v147, 0.95
    %v164 = vadd.f32 %v162, %v126
    %v165 = vadd.f32 %v163, %v127
    %s166 = scalar_lea.vmem [#allocation5], 16
    %v167 = vld [vmem:[%s166] sm:$0xff]
    %v168 = vld [vmem:[%s166 + $0x8] sm:$0xff]
    %169 = vxpose.xlu0.b32.start [1/16] %v167, 128
    %170 = vxpose.xlu0.b32.cont [2/16] %v168, 128
    %171 = vxpose.xlu0.b32.cont [3/16] 0.0, 128
    %172 = vxpose.xlu0.b32.cont [4/16] 0.0, 128
    %173 = vxpose.xlu0.b32.cont [5/16] 0.0, 128
    %174 = vxpose.xlu0.b32.cont [6/16] 0.0, 128
    %175 = vxpose.xlu0.b32.cont [7/16] 0.0, 128
    %176 = vxpose.xlu0.b32.cont [8/16] 0.0, 128
    %177 = vxpose.xlu0.b32.cont [9/16] 0.0, 128
    %178 = vxpose.xlu0.b32.cont [10/16] 0.0, 128
    %179 = vxpose.xlu0.b32.cont [11/16] 0.0, 128
    %180 = vxpose.xlu0.b32.cont [12/16] 0.0, 128
    %181 = vxpose.xlu0.b32.cont [13/16] 0.0, 128
    %182 = vxpose.xlu0.b32.cont [14/16] 0.0, 128
    %183 = vxpose.xlu0.b32.cont [15/16] 0.0, 128
    %184 = vxpose.xlu0.b32.end [16/16] 0.0, 128
    %v185 = vpop.trf.xlu0
    %v186 = vpop.trf.xlu0
    %v187 = vpop.trf.xlu0
    %v188 = vpop.trf.xlu0
    %v189 = vpop.trf.xlu0
    %v190 = vpop.trf.xlu0
    %v191 = vpop.trf.xlu0
    %v192 = vpop.trf.xlu0
    %v193 = vpop.trf.xlu0
    %v194 = vpop.trf.xlu0
    %v195 = vpop.trf.xlu0
    %v196 = vpop.trf.xlu0
    %v197 = vpop.trf.xlu0
    %v198 = vpop.trf.xlu0
    %v199 = vpop.trf.xlu0
    %v200 = vpop.trf.xlu0
    %v201 = vmul.f32 %v185, 0.95
    %v202 = vmul.f32 %v186, 0.95
    %v203 = vadd.f32 %v201, %v126
    %v204 = vadd.f32 %v202, %v127
    %209 = vrot.lane.b32.xlu0 %v164, 16
    %v210 = vpop.permute.xlu0 %209
    %211 = vrot.lane.b32.xlu0 %v165, 16
    %v212 = vpop.permute.xlu0 %211
    %213 = vrot.lane.b32.xlu0 %v203, 16
    %v214 = vpop.permute.xlu0 %213
    %215 = vrot.lane.b32.xlu0 %v204, 16
    %v216 = vpop.permute.xlu0 %215
    %vm221 = vcmask 130048
    %v222 = vsel %vm221, %v164, %v210
    %v223 = vsel %vm221, %v165, %v212
    %v224 = vsel %vm221, %v203, %v214
    %v225 = vsel %vm221, %v204, %v216
    %v226 = vld [vmem:[#allocation8] sm:$0xff]
    %v227 = vld [vmem:[#allocation8 + $0x8] sm:$0xff]
    %v228 = vld [vmem:[#allocation8 + $0x10] sm:$0xff]
    %v229 = vld [vmem:[#allocation8 + $0x18] sm:$0xff]
    %v230 = vmul.f32 %v222, %v226
    %v231 = vmul.f32 %v223, %v227
    %v232 = vmul.f32 %v224, %v228
    %v233 = vmul.f32 %v225, %v229
    %v234 = vld [vmem:[#allocation2] sm:$0xff]
    %v235 = vld [vmem:[#allocation2 + $0x8] sm:$0xff]
    %s236 = scalar_lea.vmem [#allocation2], 16
    %v237 = vld [vmem:[%s236] sm:$0xff]
    %v238 = vld [vmem:[%s236 + $0x8] sm:$0xff]
    %v239 = vmul.f32 %v234, 0.05
    %v240 = vmul.f32 %v235, 0.05
    %v241 = vmul.f32 %v237, 0.05
    %v242 = vmul.f32 %v238, 0.05
    %vm243 = vcmask 261120
    %v245 = vsel %vm243, %v230, 0
    %v248 = vsel %vm243, %v231, 0
    %v251 = vsel %vm243, %v232, 0
    %v254 = vsel %vm243, %v233, 0
    %256 = vmatprep.subr.mxu0 0.0
    %257 = vmatpush1.msra.mxu0 0.0
    %258 = vmatprep.subr.mxu0 0.0
    %259 = vmatpush1.msra.mxu0 0.0
    %260 = vmatprep.subr.mxu0 0.0
    %261 = vmatpush1.msra.mxu0 0.0
    %262 = vmatprep.subr.mxu0 0.0
    %263 = vmatpush1.msra.mxu0 0.0
    %264 = vmatprep.subr.mxu0 0.0
    %265 = vmatpush1.msra.mxu0 0.0
    %266 = vmatprep.subr.mxu0 0.0
    %267 = vmatpush1.msra.mxu0 0.0
    %268 = vmatprep.subr.mxu0 0.0
    %269 = vmatpush1.msra.mxu0 0.0
    %270 = vmatprep.subr.mxu0 0.0
    %271 = vmatpush1.msra.mxu0 0.0
    %272 = vmatprep.subr.mxu0 0.0
    %273 = vmatpush1.msra.mxu0 0.0
    %274 = vmatprep.subr.mxu0 0.0
    %275 = vmatpush1.msra.mxu0 0.0
    %276 = vmatprep.subr.mxu0 0.0
    %277 = vmatpush1.msra.mxu0 0.0
    %278 = vmatprep.subr.mxu0 0.0
    %279 = vmatpush1.msra.mxu0 0.0
    %280 = vmatprep.subr.mxu0 0.0
    %281 = vmatpush1.msra.mxu0 %v238
    %282 = vmatprep.subr.mxu0 0.0
    %283 = vmatpush1.msra.mxu0 %v237
    %284 = vmatprep.subr.mxu0 0.0
    %285 = vmatpush1.msra.mxu0 %v235
    %286 = vmatprep.subr.mxu0 0.0
    %287 = vmatpush1.msra.mxu0 %v234
    %288 = vmatprep.subr.mxu0 0.0
    %289 = vmatpush2.msra.mxu0 0.0
    %290 = vmatprep.subr.mxu0 0.0
    %291 = vmatpush2.msra.mxu0 0.0
    %292 = vmatprep.subr.mxu0 0.0
    %293 = vmatpush2.msra.mxu0 0.0
    %294 = vmatprep.subr.mxu0 0.0
    %295 = vmatpush2.msra.mxu0 0.0
    %296 = vmatprep.subr.mxu0 0.0
    %297 = vmatpush2.msra.mxu0 0.0
    %298 = vmatprep.subr.mxu0 0.0
    %299 = vmatpush2.msra.mxu0 0.0
    %300 = vmatprep.subr.mxu0 0.0
    %301 = vmatpush2.msra.mxu0 0.0
    %302 = vmatprep.subr.mxu0 0.0
    %303 = vmatpush2.msra.mxu0 0.0
    %304 = vmatprep.subr.mxu0 0.0
    %305 = vmatpush2.msra.mxu0 0.0
    %306 = vmatprep.subr.mxu0 0.0
    %307 = vmatpush2.msra.mxu0 0.0
    %308 = vmatprep.subr.mxu0 0.0
    %309 = vmatpush2.msra.mxu0 0.0
    %310 = vmatprep.subr.mxu0 0.0
    %311 = vmatpush2.msra.mxu0 0.0
    %312 = vmatprep.subr.mxu0 0.0
    %313 = vmatpush2.msra.mxu0 0.0
    %314 = vmatprep.subr.mxu0 0.0
    %315 = vmatpush2.msra.mxu0 0.0
    %316 = vmatprep.subr.mxu0 0.0
    %317 = vmatpush2.msra.mxu0 0.0
    %318 = vmatprep.subr.mxu0 0.0
    %319 = vmatpush2.msra.mxu0 0.0
    %320 = vmatprep.mubr.f32.mxu0 0.0
    %321 = vmatmul.mubr.f32.gmra.mxu0 %v245
    %v322 = vpop.f32.mrf.mxu0
    %v323 = vadd.f32 0.0, %v322
    %v324 = vpop.f32.mrf.mxu0
    %325 = vmatprep.mubr.f32.mxu0 0.0
    %326 = vmatmul.mubr.f32.gmra.mxu0 %v248
    %v327 = vpop.f32.mrf.mxu0
    %v328 = vadd.f32 0.0, %v327
    %v329 = vpop.f32.mrf.mxu0
    %330 = vmatprep.mubr.f32.mxu0 0.0
    %331 = vmatmul.mubr.f32.gmra.mxu0 %v251
    %v332 = vpop.f32.mrf.mxu0
    %v333 = vadd.f32 0.0, %v332
    %v334 = vpop.f32.mrf.mxu0
    %335 = vmatprep.mubr.f32.mxu0 0.0
    %336 = vmatmul.mubr.f32.gmra.mxu0 %v254
    %v337 = vpop.f32.mrf.mxu0
    %v338 = vadd.f32 0.0, %v337
    %v339 = vpop.f32.mrf.mxu0
    %340 = vdwg.mxu0
    %v341 = vadd.f32 %v239, %v323
    %v342 = vadd.f32 %v240, %v328
    %v343 = vadd.f32 %v241, %v333
    %v344 = vadd.f32 %v242, %v338
    %345 = vmatprep.subr.mxu0 0.0
    %346 = vmatpush1.msra.mxu0 0.0
    %347 = vmatprep.subr.mxu0 0.0
    %348 = vmatpush1.msra.mxu0 0.0
    %349 = vmatprep.subr.mxu0 0.0
    %350 = vmatpush1.msra.mxu0 0.0
    %351 = vmatprep.subr.mxu0 0.0
    %352 = vmatpush1.msra.mxu0 0.0
    %353 = vmatprep.subr.mxu0 0.0
    %354 = vmatpush1.msra.mxu0 0.0
    %355 = vmatprep.subr.mxu0 0.0
    %356 = vmatpush1.msra.mxu0 0.0
    %357 = vmatprep.subr.mxu0 0.0
    %358 = vmatpush1.msra.mxu0 0.0
    %359 = vmatprep.subr.mxu0 0.0
    %360 = vmatpush1.msra.mxu0 0.0
    %361 = vmatprep.subr.mxu0 0.0
    %362 = vmatpush1.msra.mxu0 0.0
    %363 = vmatprep.subr.mxu0 0.0
    %364 = vmatpush1.msra.mxu0 0.0
    %365 = vmatprep.subr.mxu0 0.0
    %366 = vmatpush1.msra.mxu0 0.0
    %367 = vmatprep.subr.mxu0 0.0
    %368 = vmatpush1.msra.mxu0 0.0
    %369 = vmatprep.subr.mxu0 0.0
    %370 = vmatpush1.msra.mxu0 %v344
    %371 = vmatprep.subr.mxu0 0.0
    %372 = vmatpush1.msra.mxu0 %v343
    %373 = vmatprep.subr.mxu0 0.0
    %374 = vmatpush1.msra.mxu0 %v342
    %375 = vmatprep.subr.mxu0 0.0
    %376 = vmatpush1.msra.mxu0 %v341
    %377 = vmatprep.subr.mxu0 0.0
    %378 = vmatpush2.msra.mxu0 0.0
    %379 = vmatprep.subr.mxu0 0.0
    %380 = vmatpush2.msra.mxu0 0.0
    %381 = vmatprep.subr.mxu0 0.0
    %382 = vmatpush2.msra.mxu0 0.0
    %383 = vmatprep.subr.mxu0 0.0
    %384 = vmatpush2.msra.mxu0 0.0
    %385 = vmatprep.subr.mxu0 0.0
    %386 = vmatpush2.msra.mxu0 0.0
    %387 = vmatprep.subr.mxu0 0.0
    %388 = vmatpush2.msra.mxu0 0.0
    %389 = vmatprep.subr.mxu0 0.0
    %390 = vmatpush2.msra.mxu0 0.0
    %391 = vmatprep.subr.mxu0 0.0
    %392 = vmatpush2.msra.mxu0 0.0
    %393 = vmatprep.subr.mxu0 0.0
    %394 = vmatpush2.msra.mxu0 0.0
    %395 = vmatprep.subr.mxu0 0.0
    %396 = vmatpush2.msra.mxu0 0.0
    %397 = vmatprep.subr.mxu0 0.0
    %398 = vmatpush2.msra.mxu0 0.0
    %399 = vmatprep.subr.mxu0 0.0
    %400 = vmatpush2.msra.mxu0 0.0
    %401 = vmatprep.subr.mxu0 0.0
    %402 = vmatpush2.msra.mxu0 0.0
    %403 = vmatprep.subr.mxu0 0.0
    %404 = vmatpush2.msra.mxu0 0.0
    %405 = vmatprep.subr.mxu0 0.0
    %406 = vmatpush2.msra.mxu0 0.0
    %407 = vmatprep.subr.mxu0 0.0
    %408 = vmatpush2.msra.mxu0 0.0
    %409 = vmatprep.mubr.f32.mxu0 0.0
    %410 = vmatmul.mubr.f32.gmra.mxu0 %v245
    %v411 = vpop.f32.mrf.mxu0
    %v412 = vadd.f32 0.0, %v411
    %v413 = vpop.f32.mrf.mxu0
    %414 = vmatprep.mubr.f32.mxu0 0.0
    %415 = vmatmul.mubr.f32.gmra.mxu0 %v248
    %v416 = vpop.f32.mrf.mxu0
    %v417 = vadd.f32 0.0, %v416
    %v418 = vpop.f32.mrf.mxu0
    %419 = vmatprep.mubr.f32.mxu0 0.0
    %420 = vmatmul.mubr.f32.gmra.mxu0 %v251
    %v421 = vpop.f32.mrf.mxu0
    %v422 = vadd.f32 0.0, %v421
    %v423 = vpop.f32.mrf.mxu0
    %424 = vmatprep.mubr.f32.mxu0 0.0
    %425 = vmatmul.mubr.f32.gmra.mxu0 %v254
    %v426 = vpop.f32.mrf.mxu0
    %v427 = vadd.f32 0.0, %v426
    %v428 = vpop.f32.mrf.mxu0
    %429 = vdwg.mxu0
    %v430 = vadd.f32 %v239, %v412
    %v431 = vadd.f32 %v240, %v417
    %v432 = vadd.f32 %v241, %v422
    %v433 = vadd.f32 %v242, %v427
    %438 = vrot.lane.b32.xlu0 %v341, 32
    %v439 = vpop.permute.xlu0 %438
    %440 = vrot.lane.b32.xlu0 %v342, 32
    %v441 = vpop.permute.xlu0 %440
    %442 = vrot.lane.b32.xlu0 %v343, 32
    %v443 = vpop.permute.xlu0 %442
    %444 = vrot.lane.b32.xlu0 %v344, 32
    %v445 = vpop.permute.xlu0 %444
    %454 = vrot.lane.b32.xlu0 %v430, 64
    %v455 = vpop.permute.xlu0 %454
    %456 = vrot.lane.b32.xlu0 %v431, 64
    %v457 = vpop.permute.xlu0 %456
    %458 = vrot.lane.b32.xlu0 %v432, 64
    %v459 = vpop.permute.xlu0 %458
    %460 = vrot.lane.b32.xlu0 %v433, 64
    %v461 = vpop.permute.xlu0 %460
    %v466 = vsel %vm243, %v234, %v439
    %v467 = vsel %vm243, %v235, %v441
    %v468 = vsel %vm243, %v237, %v443
    %v469 = vsel %vm243, %v238, %v445
    %vm470 = vcmask 523264
    %v471 = vsel %vm470, %v466, %v455
    %v472 = vsel %vm470, %v467, %v457
    %v473 = vsel %vm470, %v468, %v459
    %v474 = vsel %vm470, %v469, %v461
    %v475 = vld [vmem:[#allocation10] sm:$0xff]
    %v476 = vld [vmem:[#allocation10 + $0x8] sm:$0xff]
    %v477 = vld [vmem:[#allocation10 + $0x10] sm:$0xff]
    %v478 = vld [vmem:[#allocation10 + $0x18] sm:$0xff]
    %v479 = vld [vmem:[#allocation10 + $0x20] sm:$0xff]
    %v480 = vld [vmem:[#allocation10 + $0x28] sm:$0xff]
    %v481 = vld [vmem:[#allocation10 + $0x30] sm:$0xff]
    %v482 = vld [vmem:[#allocation10 + $0x38] sm:$0xff]
    %v483 = vld [vmem:[#allocation10 + $0x40] sm:$0xff]
    %v484 = vld [vmem:[#allocation10 + $0x48] sm:$0xff]
    %v485 = vld [vmem:[#allocation10 + $0x50] sm:$0xff]
    %v486 = vld [vmem:[#allocation10 + $0x58] sm:$0xff]
    %v487 = vld [vmem:[%s5] sm:$0x1]
    %v489 = vlaneseq
    %v490 = vshrl.u32 %v489, 7
    %v491 = vsub.s32 0, %v490
    %v492 = vrot.slane %v487, %v491
    %vm494 = vcmask 785408
    %v496 = vsel %vm494, %v471, 0
    %v499 = vsel %vm494, %v472, 0
    %v502 = vsel %vm494, %v473, 0
    %v505 = vsel %vm494, %v474, 0
    %507 = vmatprep.subr.mxu0 0.0
    %508 = vmatpush1.msra.mxu0 0.0
    %509 = vmatprep.subr.mxu0 0.0
    %510 = vmatpush1.msra.mxu0 0.0
    %511 = vmatprep.subr.mxu0 0.0
    %512 = vmatpush1.msra.mxu0 0.0
    %513 = vmatprep.subr.mxu0 0.0
    %514 = vmatpush1.msra.mxu0 0.0
    %515 = vmatprep.subr.mxu0 0.0
    %516 = vmatpush1.msra.mxu0 %v486
    %517 = vmatprep.subr.mxu0 0.0
    %518 = vmatpush1.msra.mxu0 %v485
    %519 = vmatprep.subr.mxu0 0.0
    %520 = vmatpush1.msra.mxu0 %v484
    %521 = vmatprep.subr.mxu0 0.0
    %522 = vmatpush1.msra.mxu0 %v483
    %523 = vmatprep.subr.mxu0 0.0
    %524 = vmatpush1.msra.mxu0 %v482
    %525 = vmatprep.subr.mxu0 0.0
    %526 = vmatpush1.msra.mxu0 %v481
    %527 = vmatprep.subr.mxu0 0.0
    %528 = vmatpush1.msra.mxu0 %v480
    %529 = vmatprep.subr.mxu0 0.0
    %530 = vmatpush1.msra.mxu0 %v479
    %531 = vmatprep.subr.mxu0 0.0
    %532 = vmatpush1.msra.mxu0 %v478
    %533 = vmatprep.subr.mxu0 0.0
    %534 = vmatpush1.msra.mxu0 %v477
    %535 = vmatprep.subr.mxu0 0.0
    %536 = vmatpush1.msra.mxu0 %v476
    %537 = vmatprep.subr.mxu0 0.0
    %538 = vmatpush1.msra.mxu0 %v475
    %539 = vmatprep.subr.mxu0 0.0
    %540 = vmatpush2.msra.mxu0 0.0
    %541 = vmatprep.subr.mxu0 0.0
    %542 = vmatpush2.msra.mxu0 0.0
    %543 = vmatprep.subr.mxu0 0.0
    %544 = vmatpush2.msra.mxu0 0.0
    %545 = vmatprep.subr.mxu0 0.0
    %546 = vmatpush2.msra.mxu0 0.0
    %547 = vmatprep.subr.mxu0 0.0
    %548 = vmatpush2.msra.mxu0 0.0
    %549 = vmatprep.subr.mxu0 0.0
    %550 = vmatpush2.msra.mxu0 0.0
    %551 = vmatprep.subr.mxu0 0.0
    %552 = vmatpush2.msra.mxu0 0.0
    %553 = vmatprep.subr.mxu0 0.0
    %554 = vmatpush2.msra.mxu0 0.0
    %555 = vmatprep.subr.mxu0 0.0
    %556 = vmatpush2.msra.mxu0 0.0
    %557 = vmatprep.subr.mxu0 0.0
    %558 = vmatpush2.msra.mxu0 0.0
    %559 = vmatprep.subr.mxu0 0.0
    %560 = vmatpush2.msra.mxu0 0.0
    %561 = vmatprep.subr.mxu0 0.0
    %562 = vmatpush2.msra.mxu0 0.0
    %563 = vmatprep.subr.mxu0 0.0
    %564 = vmatpush2.msra.mxu0 0.0
    %565 = vmatprep.subr.mxu0 0.0
    %566 = vmatpush2.msra.mxu0 0.0
    %567 = vmatprep.subr.mxu0 0.0
    %568 = vmatpush2.msra.mxu0 0.0
    %569 = vmatprep.subr.mxu0 0.0
    %570 = vmatpush2.msra.mxu0 0.0
    %571 = vmatprep.mubr.f32.mxu0 0.0
    %572 = vmatmul.mubr.f32.gmra.mxu0 %v496
    %v573 = vpop.f32.mrf.mxu0
    %v574 = vadd.f32 %v492, %v573
    %v575 = vpop.f32.mrf.mxu0
    %576 = vmatprep.mubr.f32.mxu0 0.0
    %577 = vmatmul.mubr.f32.gmra.mxu0 %v499
    %v578 = vpop.f32.mrf.mxu0
    %v579 = vadd.f32 %v492, %v578
    %v580 = vpop.f32.mrf.mxu0
    %581 = vmatprep.mubr.f32.mxu0 0.0
    %582 = vmatmul.mubr.f32.gmra.mxu0 %v502
    %v583 = vpop.f32.mrf.mxu0
    %v584 = vadd.f32 %v492, %v583
    %v585 = vpop.f32.mrf.mxu0
    %586 = vmatprep.mubr.f32.mxu0 0.0
    %587 = vmatmul.mubr.f32.gmra.mxu0 %v505
    %v588 = vpop.f32.mrf.mxu0
    %v589 = vadd.f32 %v492, %v588
    %v590 = vpop.f32.mrf.mxu0
    %591 = vdwg.mxu0
    %592 = vst [vmem:[#allocation11] sm:$0xff] %v574
    %593 = vst [vmem:[#allocation11 + $0x8] sm:$0xff] %v579
    %594 = vst [vmem:[#allocation11 + $0x10] sm:$0xff] %v584
    %595 = vst [vmem:[#allocation11 + $0x18] sm:$0xff] %v589
    // Predicated region
    $region46: #{tpu_custom_call.1} parent=1 // pred_check
      _
    $region47: #{tpu_custom_call.1} parent=1 // pred_check_branch
      %597 = sbr.rel (0) target = $region49
    $region48: #{tpu_custom_call.1} parent=1 // pred_region
      %s599 = ssub.s32 512, 512
      %600 = vsyncadd [#allocation4], %s599
      %s601 = sshll.u32 [#allocation11], 4
      %s602 = int_to_ptr.vmem [resolvable:$true] %s601
      %607 = dma.vmem_to_hbm [thread:$0]  %s602, 512, %s6, [#allocation4], 128, 128, 8
    $region49: #{tpu_custom_call.1} parent=1 // pred_fallthru
      _
    // Predicated region
    $region50: #{tpu_custom_call.1} parent=1 // pred_check
      _
    $region51: #{tpu_custom_call.1} parent=1 // pred_check_branch
      %609 = sbr.rel (0) target = $region53
    $region52: #{tpu_custom_call.1} parent=1 // pred_region
      %610 = dma.done [#allocation4], 512
    $region53: #{tpu_custom_call.1} parent=1 // pred_fallthru
      _
    %611 = vsyncpa [#allocation3], 1
    %612 = vsyncpa [#allocation6], 1
    %613 = vsyncpa [#allocation9], 1
    %614 = vsyncpa [#allocation4], 1

</llo_original>
